<compile_context>
chip_gen: v6e
topology: v6e:2x2x1
jax: 0.10.0
libtpu: 0.0.40
codegen_flags: <defaults>
</compile_context>

<pallas_src>
import numpy as np

import jax
import jax.numpy as jnp
from jax.experimental import pallas as pl
from jax.experimental.pallas import tpu as pltpu


# Inter-layer activations + matmul operands in bf16 (halves HBM/VMEM traffic,
# several-x the MXU rate on v6e/v7x).  Accumulator / GroupNorm / LeakyReLU f32.
_ACT_DTYPE = jnp.bfloat16
# Scoped-VMEM budget: above v5e's 16 MiB default, below v7x's 64 MiB physical.
_VMEM_LIMIT = 48 * 1024 * 1024

# Tap sets.  Stride-1 3x3 conv: the 9 neighborhood offsets.  Stride-2 deconv:
# polyphase form only needs compact-grid taps from {(0,0),(0,1),(1,0),(1,1)}.
_S1_TAPS = tuple((dy, dx) for dy in (-1, 0, 1) for dx in (-1, 0, 1))
_UP_TAPS = ((0, 0), (0, 1), (1, 0), (1, 1))


def stride_generator(N, reverse=False):
    strides = [1, 2] * 10
    if reverse:
        return list(reversed(strides[:N]))
    return strides[:N]


def _flank(Wp):
    # Flank >= Wp+1 (max tap offset) rounded up to 128 so every tap view is
    # in-bounds and the payload store starts at a 128-aligned lane offset.
    return ((Wp + 1 + 127) // 128) * 128


# ----------------------------------------------------------------------------
# Pallas kernel: fused {3x3 conv | 4-phase deconv} + GroupNorm(2)
#                + LeakyReLU(0.2) (+ optional fused 1x1 readout)
# ----------------------------------------------------------------------------
def _make_kernel(n_in, cins, Npad, FL, offsets, n_elem, fuse_readout):
    inv_n = 1.0 / n_elem
    eps = 1e-5

    def kernel(*refs):
        x_refs = refs[:n_in]
        w_ref, b_ref, g_ref, be_ref, g0_ref, m_ref = refs[n_in:n_in + 6]
        idx = n_in + 6
        if fuse_readout:
            rw_ref, rb_ref = refs[idx], refs[idx + 1]
            idx += 2
        o_ref = refs[idx]
        rhs_ref = refs[idx + 1]                       # VMEM scratch (Ktot, Npad)

        # ---- Stack every (input, tap) shifted view into one lane-dense RHS so
        #      the whole conv is a single K = n_taps*sum(Cin) MXU matmul. ----
        row = 0
        for ii in range(n_in):
            xv = x_refs[ii][0]                        # (Cin_i, L), bf16
            for off in offsets:                       # static lane offsets
                rhs_ref[row:row + cins[ii], :] = xv[:, off:off + Npad]
                row += cins[ii]

        acc = jnp.dot(w_ref[...], rhs_ref[...],
                      preferred_element_type=jnp.float32)    # (C_acc, Npad) f32
        y = acc + b_ref[...]

        maskb = m_ref[...] > 0.5                      # (1, Npad): non-border
        g0 = g0_ref[...]                              # (C_acc, 1): 1. = group 0

        # ---- GroupNorm(2): per-channel masked lane reductions first, then the
        #      group combine happens on tiny (C_acc, 1) vectors. ----
        ym = jnp.where(maskb, y, 0.0)
        s_ch = jnp.sum(ym, axis=1, keepdims=True)     # (C_acc, 1)
        s0 = jnp.sum(s_ch * g0)
        s1 = jnp.sum(s_ch) - s0
        meanv = (g0 * s0 + (1.0 - g0) * s1) * inv_n

        d = y - meanv
        dd = jnp.where(maskb, d * d, 0.0)
        v_ch = jnp.sum(dd, axis=1, keepdims=True)     # (C_acc, 1)
        v0 = jnp.sum(v_ch * g0)
        v1 = jnp.sum(v_ch) - v0
        varv = (g0 * v0 + (1.0 - g0) * v1) * inv_n
        rstdv = jax.lax.rsqrt(varv + eps)             # (C_acc, 1)

        z = d * (rstdv * g_ref[...]) + be_ref[...]
        act = jnp.where(z >= 0, z, 0.2 * z)           # LeakyReLU(0.2)
        act = jnp.where(maskb, act, 0.0)              # border -> exact 0 (also
                                                      # quarantines flank junk)

        if fuse_readout:
            out = jnp.dot(rw_ref[...], act.astype(_ACT_DTYPE),
                          preferred_element_type=jnp.float32) + rb_ref[...]
        else:
            out = act

        # Single 128-aligned lane-dense payload store; flank lanes are never
        # consumed by valid positions downstream (select-quarantined), so no
        # flank-zero stores are needed.
        o_ref[0, :, FL:FL + Npad] = out.astype(o_ref.dtype)

    return kernel


# ----------------------------------------------------------------------------
# pallas_call wrapper
# ----------------------------------------------------------------------------
def _make_mask(Ho, Wo):
    Hp, Wp = Ho + 2, Wo + 2
    m = np.zeros((Hp, Wp), np.float32)
    m[1:1 + Ho, 1:1 + Wo] = 1.0
    return jnp.asarray(m.reshape(1, Hp * Wp))


def _convsc_call(xs, w_fold, b_fold, gamma_fold, beta_fold, g0ind,
                 Ho, Wo, taps, readout=None, out_dtype=_ACT_DTYPE):
    """xs: flanked-flat activations (B, Cin_i, L) on the (Ho, Wo) grid.
    w_fold: (C_acc, len(taps)*sum(Cin_i)) tap/phase-folded weight."""
    n_in = len(xs)
    B = xs[0].shape[0]
    C_acc = w_fold.shape[0]
    Hp, Wp = Ho + 2, Wo + 2
    Npad = Hp * Wp
    FL = _flank(Wp)
    L = Npad + 2 * FL
    cins = [int(x.shape[1]) for x in xs]
    Ktot = len(taps) * sum(cins)
    assert w_fold.shape[1] == Ktot, (w_fold.shape, Ktot)
    offsets = [FL + dy * Wp + dx for (dy, dx) in taps]
    n_elem = float((C_acc // 2) * Ho * Wo)            # elements per GN group
    C_store = C_acc if readout is None else readout[0].shape[0]
    mask = _make_mask(Ho, Wo)
    kernel = _make_kernel(n_in, cins, Npad, FL, offsets, n_elem,
                          readout is not None)

    in_specs, args = [], []
    for x in xs:
        assert x.shape[2] == L, (x.shape, L)
        in_specs.append(pl.BlockSpec((1, x.shape[1], L), lambda bi: (bi, 0, 0)))
        args.append(x)

    def const2d(a):
        # TODO(synk): pipeline_mode=pl.Buffered(1) on these grid-invariant
        # operands would avoid double-buffering them per batch step.
        return pl.BlockSpec(a.shape, lambda bi: (0, 0))

    consts = [w_fold.astype(_ACT_DTYPE),
              b_fold.reshape(C_acc, 1).astype(jnp.float32),
              gamma_fold.reshape(C_acc, 1).astype(jnp.float32),
              beta_fold.reshape(C_acc, 1).astype(jnp.float32),
              g0ind.reshape(C_acc, 1).astype(jnp.float32),
              mask]
    if readout is not None:
        rw, rb = readout
        consts += [rw.astype(_ACT_DTYPE),
                   rb.reshape(C_store, 1).astype(jnp.float32)]
    args += consts
    in_specs += [const2d(a) for a in consts]

    act_b = 2 if _ACT_DTYPE == jnp.bfloat16 else 4
    out_b = 2 if out_dtype == jnp.bfloat16 else 4
    flops = 2 * C_acc * Ktot * Npad * B
    if readout is not None:
        flops += 2 * C_store * C_acc * Npad * B
    bytes_accessed = (B * (sum(cins) * L * act_b + C_store * L * out_b)
                      + C_acc * Ktot * act_b)

    return pl.pallas_call(
        kernel,
        out_shape=jax.ShapeDtypeStruct((B, C_store, L), out_dtype),
        grid_spec=pltpu.PrefetchScalarGridSpec(
            num_scalar_prefetch=0,
            grid=(B,),
            in_specs=in_specs,
            out_specs=pl.BlockSpec((1, C_store, L), lambda bi: (bi, 0, 0)),
            scratch_shapes=[pltpu.VMEM((Ktot, Npad), _ACT_DTYPE)],
        ),
        compiler_params=pltpu.CompilerParams(
            dimension_semantics=("parallel",),
            vmem_limit_bytes=_VMEM_LIMIT),
        cost_estimate=pl.CostEstimate(flops=int(flops),
                                      transcendentals=int(B * C_acc),
                                      bytes_accessed=int(bytes_accessed)),
    )(*args)


# ----------------------------------------------------------------------------
# Weight folding (torch layouts -> single folded MXU weight matrices)
# ----------------------------------------------------------------------------
def _fold_conv2d(w, splits):
    """Conv2d weight (Cout, Cin_total, 3, 3) -> (Cout, 9 * sum(split sizes)).
    Column blocks ordered [input_part, tap] to match the kernel's RHS stack."""
    blocks = []
    for (s0, s1) in splits:
        for (dy, dx) in _S1_TAPS:
            blocks.append(w[:, s0:s1, dy + 1, dx + 1])
    return jnp.concatenate(blocks, axis=1)


def _fold_convT2d(w):
    """ConvTranspose2d weight (Cin, Cout, 3, 3) -> polyphase-folded
    (4*Cout, 4*Cin).  Output rows are phase-major (py, px); column blocks are
    the shared compact-grid taps in _UP_TAPS order (unused taps zero-padded so
    all four phases share one stacked RHS and one matmul)."""
    Cin, Cout = w.shape[0], w.shape[1]

    def kidx(pbit, d):    # kernel index contributing to output parity `pbit`
        if pbit == 0:
            return 1 if d == 0 else None
        return 0 if d == 1 else 2

    rows = []
    for py in (0, 1):
        for px in (0, 1):
            cols = []
            for (dy, dx) in _UP_TAPS:
                ky, kx = kidx(py, dy), kidx(px, dx)
                if ky is None or kx is None:
                    cols.append(jnp.zeros((Cout, Cin), w.dtype))
                else:
                    cols.append(w[:, :, ky, kx].T)    # (Cout, Cin)
            rows.append(jnp.concatenate(cols, axis=1))
    return jnp.concatenate(rows, axis=0)


# ----------------------------------------------------------------------------
# Plain-JAX layout glue
# ----------------------------------------------------------------------------
def _to_flanked(x_nchw):
    """(B,C,H,W) -> flanked padded-flat (B, C, L) in _ACT_DTYPE (zero border)."""
    B, C, H, W = x_nchw.shape
    Hp, Wp = H + 2, W + 2
    FL = _flank(Wp)
    xp = jnp.pad(x_nchw.astype(_ACT_DTYPE), ((0, 0), (0, 0), (1, 1), (1, 1)))
    flat = xp.reshape(B, C, Hp * Wp)
    return jnp.pad(flat, ((0, 0), (0, 0), (FL, FL)))


def _phases_to_flanked(y, Cout, H, W):
    """Phase-stacked stride-2 output (B, 4*Cout, L) on the compact (H, W) grid
    -> flanked layout at (2H, 2W).  Pure layout glue (crop/transpose/pad)."""
    B = y.shape[0]
    Hp, Wp = H + 2, W + 2
    FL = _flank(Wp)
    ph = y[:, :, FL:FL + Hp * Wp].reshape(B, 2, 2, Cout, Hp, Wp)
    ph = ph[:, :, :, :, 1:1 + H, 1:1 + W]             # (B, py, px, C, H, W)
    up = ph.transpose(0, 3, 4, 1, 5, 2).reshape(B, Cout, 2 * H, 2 * W)
    return _to_flanked(up)


def _group0_indicator(c):
    return (jnp.arange(c) < (c // 2)).astype(jnp.float32)


# ----------------------------------------------------------------------------
# Decoder forward
# ----------------------------------------------------------------------------
def decoder_forward(params, hid_nchw, enc1_nchw):
    B, C_hid, H, W = hid_nchw.shape
    dec = params["dec"]

    x = _to_flanked(hid_nchw)
    curH, curW = H, W
    for layer in dec[:-1]:
        cout = layer["b"].shape[0]
        if layer["stride"] == 2:
            # Polyphase deconv: compact-grid kernel, 4 phases stacked on the
            # output channels; no zero-dilated intermediate, no zero MXU work.
            w_fold = _fold_convT2d(layer["w"])
            y = _convsc_call([x], w_fold,
                             jnp.tile(layer["b"], 4),
                             jnp.tile(layer["gamma"], 4),
                             jnp.tile(layer["beta"], 4),
                             jnp.tile(_group0_indicator(cout), 4),
                             curH, curW, _UP_TAPS)
            x = _phases_to_flanked(y, cout, curH, curW)
            curH, curW = 2 * curH, 2 * curW
        else:
            w_fold = _fold_conv2d(layer["w"], [(0, layer["w"].shape[1])])
            x = _convsc_call([x], w_fold, layer["b"], layer["gamma"],
                             layer["beta"], _group0_indicator(cout),
                             curH, curW, _S1_TAPS)

    # Last ConvSC: skip-concat fused (two inputs, split weight) + fused 1x1
    # readout -> no concatenated tensor, no extra full-resolution round trip.
    last = dec[-1]
    assert last["stride"] == 1, "reversed stride schedule always ends on 1"
    cout = last["b"].shape[0]
    e = _to_flanked(enc1_nchw)
    c0 = x.shape[1]
    w_fold = _fold_conv2d(last["w"], [(0, c0), (c0, last["w"].shape[1])])
    rw = params["readout"]["w"][:, :, 0, 0]            # (C_out, C_hid)
    rb = params["readout"]["b"]
    y = _convsc_call([x, e], w_fold, last["b"], last["gamma"], last["beta"],
                     _group0_indicator(cout), curH, curW, _S1_TAPS,
                     readout=(rw, rb), out_dtype=jnp.float32)

    Hp, Wp = curH + 2, curW + 2
    FL = _flank(Wp)
    y = y[:, :, FL:FL + Hp * Wp].reshape(B, -1, Hp, Wp)
    return y[:, :, 1:1 + curH, 1:1 + curW]             # NCHW


# ----------------------------------------------------------------------------
# Deterministic parameter init (torch-layout weights)
# ----------------------------------------------------------------------------
def init_params(key, C_hid, C_out, N_S):
    strides = stride_generator(N_S, reverse=True)
    in_chs = [C_hid] * (N_S - 1) + [2 * C_hid]
    dec = []
    for i, s in enumerate(strides):
        cin, cout = in_chs[i], C_hid
        key, k1, k2, k3, k4 = jax.random.split(key, 5)
        transpose = (s != 1)   # ConvSC forces transpose=False when stride == 1
        if transpose:
            w = 0.1 * jax.random.normal(k1, (cin, cout, 3, 3), jnp.float32)
        else:
            w = 0.1 * jax.random.normal(k1, (cout, cin, 3, 3), jnp.float32)
        dec.append(dict(
            stride=s, transpose=transpose, w=w,
            b=0.1 * jax.random.normal(k2, (cout,), jnp.float32),
            gamma=1.0 + 0.1 * jax.random.normal(k3, (cout,), jnp.float32),
            beta=0.1 * jax.random.normal(k4, (cout,), jnp.float32),
        ))
    key, k1, k2 = jax.random.split(key, 3)
    readout = dict(
        w=0.1 * jax.random.normal(k1, (C_out, C_hid, 1, 1), jnp.float32),
        b=0.1 * jax.random.normal(k2, (C_out,), jnp.float32),
    )
    return dict(dec=dec, readout=readout)


# ----------------------------------------------------------------------------
# Pure-JAX reference (NCHW, mirrors PyTorch semantics) for a numeric check
# ----------------------------------------------------------------------------
def _ref_conv2d(x, w, b, stride=1, padding=1):
    y = jax.lax.conv_general_dilated(
        x, w, window_strides=(stride, stride),
        padding=[(padding, padding)] * 2,
        dimension_numbers=("NCHW", "OIHW", "NCHW"))
    return y + b[None, :, None, None]


def _ref_convT2d(x, w, b, stride=2, padding=1, output_padding=1):
    k = w.shape[2]
    w2 = jnp.flip(w, axis=(2, 3)).transpose(1, 0, 2, 3)  # (Cout, Cin, kh, kw)
    y = jax.lax.conv_general_dilated(
        x, w2, window_strides=(1, 1),
        padding=[(k - 1 - padding, k - 1 - padding + output_padding)] * 2,
        lhs_dilation=(stride, stride),
        dimension_numbers=("NCHW", "OIHW", "NCHW"))
    return y + b[None, :, None, None]


def _ref_gn_lrelu(x, gamma, beta, groups=2, eps=1e-5):
    B, C, H, W = x.shape
    xg = x.reshape(B, groups, C // groups, H, W)
    m = xg.mean(axis=(2, 3, 4), keepdims=True)
    v = ((xg - m) ** 2).mean(axis=(2, 3, 4), keepdims=True)
    xn = ((xg - m) / jnp.sqrt(v + eps)).reshape(B, C, H, W)
    xn = xn * gamma[None, :, None, None] + beta[None, :, None, None]
    return jnp.where(xn >= 0, xn, 0.2 * xn)


def reference_forward(params, hid, enc1):
    def convsc(layer, x):
        if layer["transpose"]:
            y = _ref_convT2d(x, layer["w"], layer["b"])
        else:
            y = _ref_conv2d(x, layer["w"], layer["b"], stride=1, padding=1)
        return _ref_gn_lrelu(y, layer["gamma"], layer["beta"])
    x = hid
    for layer in params["dec"][:-1]:
        x = convsc(layer, x)
    x = jnp.concatenate([x, enc1], axis=1)
    x = convsc(params["dec"][-1], x)
    return _ref_conv2d(x, params["readout"]["w"], params["readout"]["b"],
                       stride=1, padding=0)


# ----------------------------------------------------------------------------
if __name__ == "__main__":
    C_hid, C_out, N_S = 8, 4, 4
    B, H, W = 2, 4, 4

    key = jax.random.PRNGKey(0)
    kp, kh, ke = jax.random.split(key, 3)
    params = init_params(kp, C_hid, C_out, N_S)

    hid = jax.random.normal(kh, (B, C_hid, H, W), jnp.float32)
    enc1 = jax.random.normal(ke, (B, C_hid, 4 * H, 4 * W), jnp.float32)

    out = decoder_forward(params, hid, enc1)
    out = jax.block_until_ready(out)

    assert out.shape == (B, C_out, 4 * H, 4 * W), out.shape
    ref = reference_forward(params, hid, enc1)
    max_err = float(jnp.max(jnp.abs(out - ref)))
    # bf16 inter-layer activations / matmul operands (f32 accumulation + GN),
    # so the tolerance is modestly looser than the all-f32 version.
    assert jnp.allclose(out, ref, atol=5e-2, rtol=5e-2), max_err

    print("KERNEL_OK")
</pallas_src>

<mosaic_0001>
module attributes {stable_mosaic.version = 11 : i64} {
  func.func @kernel(%arg0: i32, %arg1: memref<1x8x292xbf16, #tpu.memory_space<vmem>>, %arg2: memref<32x32xbf16, #tpu.memory_space<vmem>>, %arg3: memref<32x1xf32, #tpu.memory_space<vmem>>, %arg4: memref<32x1xf32, #tpu.memory_space<vmem>>, %arg5: memref<32x1xf32, #tpu.memory_space<vmem>>, %arg6: memref<32x1xf32, #tpu.memory_space<vmem>>, %arg7: memref<1x36xf32, #tpu.memory_space<vmem>>, %arg8: memref<1x32x292xbf16, #tpu.memory_space<vmem>>, %arg9: memref<32x36xbf16, #tpu.memory_space<vmem>>) attributes {dimension_semantics = [#tpu.dimension_semantics<parallel>], iteration_bounds = array<i64: 2>, scalar_prefetch = 0 : i64, scratch_operands = 1 : i64, tpu.core_type = #tpu.core_type<tc>, window_params = [{transform_indices = @transform_0, window_bounds = array<i64: 1, 8, 292>}, {pipeline_mode = #tpu.pipeline_mode<synchronous>, transform_indices = @transform_1, window_bounds = array<i64: 32, 32>}, {pipeline_mode = #tpu.pipeline_mode<synchronous>, transform_indices = @transform_2, window_bounds = array<i64: 32, 1>}, {pipeline_mode = #tpu.pipeline_mode<synchronous>, transform_indices = @transform_3, window_bounds = array<i64: 32, 1>}, {pipeline_mode = #tpu.pipeline_mode<synchronous>, transform_indices = @transform_4, window_bounds = array<i64: 32, 1>}, {pipeline_mode = #tpu.pipeline_mode<synchronous>, transform_indices = @transform_5, window_bounds = array<i64: 32, 1>}, {pipeline_mode = #tpu.pipeline_mode<synchronous>, transform_indices = @transform_6, window_bounds = array<i64: 1, 36>}, {transform_indices = @transform_7, window_bounds = array<i64: 1, 32, 292>}]} {
    %c0 = arith.constant 0 : index
    %c0_0 = arith.constant 0 : index
    %c0_1 = arith.constant 0 : index
    %0 = vector.load %arg1[%c0, %c0_0, %c0_1] : memref<1x8x292xbf16, #tpu.memory_space<vmem>>, vector<1x8x292xbf16>
    %1 = vector.shape_cast %0 : vector<1x8x292xbf16> to vector<8x292xbf16>
    %2 = vector.extract_strided_slice %1 {offsets = [0, 128], sizes = [8, 36], strides = [1, 1]} : vector<8x292xbf16> to vector<8x36xbf16>
    %c0_2 = arith.constant 0 : index
    %c0_3 = arith.constant 0 : index
    %3 = vector.load %arg9[%c0_2, %c0_3] : memref<32x36xbf16, #tpu.memory_space<vmem>>, vector<8x36xbf16>
    tpu.vector_store %arg9[%c0_2, %c0_3], %2 {strides = array<i32>} : memref<32x36xbf16, #tpu.memory_space<vmem>>, vector<8x36xbf16>,
    %4 = vector.extract_strided_slice %1 {offsets = [0, 129], sizes = [8, 36], strides = [1, 1]} : vector<8x292xbf16> to vector<8x36xbf16>
    %c8 = arith.constant 8 : index
    %c0_4 = arith.constant 0 : index
    %5 = vector.load %arg9[%c8, %c0_4] : memref<32x36xbf16, #tpu.memory_space<vmem>>, vector<8x36xbf16>
    tpu.vector_store %arg9[%c8, %c0_4], %4 {strides = array<i32>} : memref<32x36xbf16, #tpu.memory_space<vmem>>, vector<8x36xbf16>,
    %6 = vector.extract_strided_slice %1 {offsets = [0, 134], sizes = [8, 36], strides = [1, 1]} : vector<8x292xbf16> to vector<8x36xbf16>
    %c16 = arith.constant 16 : index
    %c0_5 = arith.constant 0 : index
    %7 = vector.load %arg9[%c16, %c0_5] : memref<32x36xbf16, #tpu.memory_space<vmem>>, vector<8x36xbf16>
    tpu.vector_store %arg9[%c16, %c0_5], %6 {strides = array<i32>} : memref<32x36xbf16, #tpu.memory_space<vmem>>, vector<8x36xbf16>,
    %8 = vector.extract_strided_slice %1 {offsets = [0, 135], sizes = [8, 36], strides = [1, 1]} : vector<8x292xbf16> to vector<8x36xbf16>
    %c24 = arith.constant 24 : index
    %c0_6 = arith.constant 0 : index
    %9 = vector.load %arg9[%c24, %c0_6] : memref<32x36xbf16, #tpu.memory_space<vmem>>, vector<8x36xbf16>
    tpu.vector_store %arg9[%c24, %c0_6], %8 {strides = array<i32>} : memref<32x36xbf16, #tpu.memory_space<vmem>>, vector<8x36xbf16>,
    %c0_7 = arith.constant 0 : index
    %c0_8 = arith.constant 0 : index
    %10 = vector.load %arg2[%c0_7, %c0_8] : memref<32x32xbf16, #tpu.memory_space<vmem>>, vector<32x32xbf16>
    %c0_9 = arith.constant 0 : index
    %c0_10 = arith.constant 0 : index
    %11 = vector.load %arg9[%c0_9, %c0_10] : memref<32x36xbf16, #tpu.memory_space<vmem>>, vector<32x36xbf16>
    %cst = arith.constant dense<0.000000e+00> : vector<32x36xf32>
    %12 = tpu.matmul %10, %11, %cst {dimension_numbers = #tpu.dot_dimension_numbers<[1], [0], [0], [1], [0, 0, 1, 1], [], []>} : vector<32x32xbf16>, vector<32x36xbf16>, vector<32x36xf32> -> vector<32x36xf32>
    %c0_11 = arith.constant 0 : index
    %c0_12 = arith.constant 0 : index
    %13 = vector.load %arg3[%c0_11, %c0_12] : memref<32x1xf32, #tpu.memory_space<vmem>>, vector<32x1xf32>
    %14 = vector.broadcast %13 : vector<32x1xf32> to vector<32x36xf32>
    %15 = arith.addf %12, %14 : vector<32x36xf32>
    %c0_13 = arith.constant 0 : index
    %c0_14 = arith.constant 0 : index
    %16 = vector.load %arg7[%c0_13, %c0_14] : memref<1x36xf32, #tpu.memory_space<vmem>>, vector<1x36xf32>
    %cst_15 = arith.constant 5.000000e-01 : f32
    %17 = vector.broadcast %cst_15 : f32 to vector<1x36xf32>
    %18 = arith.cmpf ogt, %16, %17 : vector<1x36xf32>
    %c0_16 = arith.constant 0 : index
    %c0_17 = arith.constant 0 : index
    %19 = vector.load %arg6[%c0_16, %c0_17] : memref<32x1xf32, #tpu.memory_space<vmem>>, vector<32x1xf32>
    %cst_18 = arith.constant 0.000000e+00 : f32
    %20 = vector.shape_cast %18 : vector<1x36xi1> to vector<1x36xi1>
    %21 = vector.broadcast %20 : vector<1x36xi1> to vector<32x36xi1>
    %22 = vector.broadcast %cst_18 : f32 to vector<32x36xf32>
    %23 = arith.select %21, %15, %22 : vector<32x36xi1>, vector<32x36xf32>
    %cst_19 = arith.constant dense<0.000000e+00> : vector<32xf32>
    %24 = vector.multi_reduction <add>, %23, %cst_19 [1] : vector<32x36xf32> to vector<32xf32>
    %25 = vector.shape_cast %24 : vector<32xf32> to vector<32x1xf32>
    %26 = arith.mulf %25, %19 : vector<32x1xf32>
    %27 = vector.shape_cast %26 : vector<32x1xf32> to vector<1x32x1xf32>
    %cst_20 = arith.constant dense<0.000000e+00> : vector<1xf32>
    %28 = vector.multi_reduction <add>, %27, %cst_20 [1, 2] : vector<1x32x1xf32> to vector<1xf32>
    %29 = vector.shape_cast %28 : vector<1xf32> to vector<1x1x1xf32>
    %30 = vector.extract %29[0, 0, 0] : f32 from vector<1x1x1xf32>
    %31 = vector.shape_cast %25 : vector<32x1xf32> to vector<1x32x1xf32>
    %cst_21 = arith.constant dense<0.000000e+00> : vector<1xf32>
    %32 = vector.multi_reduction <add>, %31, %cst_21 [1, 2] : vector<1x32x1xf32> to vector<1xf32>
    %33 = vector.shape_cast %32 : vector<1xf32> to vector<1x1x1xf32>
    %34 = vector.extract %33[0, 0, 0] : f32 from vector<1x1x1xf32>
    %35 = arith.subf %34, %30 : f32
    %36 = vector.broadcast %30 : f32 to vector<32x1xf32>
    %37 = arith.mulf %19, %36 : vector<32x1xf32>
    %cst_22 = arith.constant 1.000000e+00 : f32
    %38 = vector.broadcast %cst_22 : f32 to vector<32x1xf32>
    %39 = arith.subf %38, %19 : vector<32x1xf32>
    %40 = vector.broadcast %35 : f32 to vector<32x1xf32>
    %41 = arith.mulf %39, %40 : vector<32x1xf32>
    %42 = arith.addf %37, %41 : vector<32x1xf32>
    %cst_23 = arith.constant 3.906250e-03 : f32
    %43 = vector.broadcast %cst_23 : f32 to vector<32x1xf32>
    %44 = arith.mulf %42, %43 : vector<32x1xf32>
    %45 = vector.broadcast %44 : vector<32x1xf32> to vector<32x36xf32>
    %46 = arith.subf %15, %45 : vector<32x36xf32>
    %47 = arith.mulf %46, %46 : vector<32x36xf32>
    %cst_24 = arith.constant 0.000000e+00 : f32
    %48 = vector.shape_cast %18 : vector<1x36xi1> to vector<1x36xi1>
    %49 = vector.broadcast %48 : vector<1x36xi1> to vector<32x36xi1>
    %50 = vector.broadcast %cst_24 : f32 to vector<32x36xf32>
    %51 = arith.select %49, %47, %50 : vector<32x36xi1>, vector<32x36xf32>
    %cst_25 = arith.constant dense<0.000000e+00> : vector<32xf32>
    %52 = vector.multi_reduction <add>, %51, %cst_25 [1] : vector<32x36xf32> to vector<32xf32>
    %53 = vector.shape_cast %52 : vector<32xf32> to vector<32x1xf32>
    %54 = arith.mulf %53, %19 : vector<32x1xf32>
    %55 = vector.shape_cast %54 : vector<32x1xf32> to vector<1x32x1xf32>
    %cst_26 = arith.constant dense<0.000000e+00> : vector<1xf32>
    %56 = vector.multi_reduction <add>, %55, %cst_26 [1, 2] : vector<1x32x1xf32> to vector<1xf32>
    %57 = vector.shape_cast %56 : vector<1xf32> to vector<1x1x1xf32>
    %58 = vector.extract %57[0, 0, 0] : f32 from vector<1x1x1xf32>
    %59 = vector.shape_cast %53 : vector<32x1xf32> to vector<1x32x1xf32>
    %cst_27 = arith.constant dense<0.000000e+00> : vector<1xf32>
    %60 = vector.multi_reduction <add>, %59, %cst_27 [1, 2] : vector<1x32x1xf32> to vector<1xf32>
    %61 = vector.shape_cast %60 : vector<1xf32> to vector<1x1x1xf32>
    %62 = vector.extract %61[0, 0, 0] : f32 from vector<1x1x1xf32>
    %63 = arith.subf %62, %58 : f32
    %64 = vector.broadcast %58 : f32 to vector<32x1xf32>
    %65 = arith.mulf %19, %64 : vector<32x1xf32>
    %cst_28 = arith.constant 1.000000e+00 : f32
    %66 = vector.broadcast %cst_28 : f32 to vector<32x1xf32>
    %67 = arith.subf %66, %19 : vector<32x1xf32>
    %68 = vector.broadcast %63 : f32 to vector<32x1xf32>
    %69 = arith.mulf %67, %68 : vector<32x1xf32>
    %70 = arith.addf %65, %69 : vector<32x1xf32>
    %cst_29 = arith.constant 3.906250e-03 : f32
    %71 = vector.broadcast %cst_29 : f32 to vector<32x1xf32>
    %72 = arith.mulf %70, %71 : vector<32x1xf32>
    %cst_30 = arith.constant 9.99999974E-6 : f32
    %73 = vector.broadcast %cst_30 : f32 to vector<32x1xf32>
    %74 = arith.addf %72, %73 : vector<32x1xf32>
    %75 = math.rsqrt %74 : vector<32x1xf32>
    %c0_31 = arith.constant 0 : index
    %c0_32 = arith.constant 0 : index
    %76 = vector.load %arg4[%c0_31, %c0_32] : memref<32x1xf32, #tpu.memory_space<vmem>>, vector<32x1xf32>
    %77 = arith.mulf %75, %76 : vector<32x1xf32>
    %78 = vector.broadcast %77 : vector<32x1xf32> to vector<32x36xf32>
    %79 = arith.mulf %46, %78 : vector<32x36xf32>
    %c0_33 = arith.constant 0 : index
    %c0_34 = arith.constant 0 : index
    %80 = vector.load %arg5[%c0_33, %c0_34] : memref<32x1xf32, #tpu.memory_space<vmem>>, vector<32x1xf32>
    %81 = vector.broadcast %80 : vector<32x1xf32> to vector<32x36xf32>
    %82 = arith.addf %79, %81 : vector<32x36xf32>
    %cst_35 = arith.constant 0.000000e+00 : f32
    %83 = vector.broadcast %cst_35 : f32 to vector<32x36xf32>
    %84 = arith.cmpf oge, %82, %83 : vector<32x36xf32>
    %cst_36 = arith.constant 2.000000e-01 : f32
    %85 = vector.broadcast %cst_36 : f32 to vector<32x36xf32>
    %86 = arith.mulf %85, %82 : vector<32x36xf32>
    %87 = arith.select %84, %82, %86 : vector<32x36xi1>, vector<32x36xf32>
    %cst_37 = arith.constant 0.000000e+00 : f32
    %88 = vector.shape_cast %18 : vector<1x36xi1> to vector<1x36xi1>
    %89 = vector.broadcast %88 : vector<1x36xi1> to vector<32x36xi1>
    %90 = vector.broadcast %cst_37 : f32 to vector<32x36xf32>
    %91 = arith.select %89, %87, %90 : vector<32x36xi1>, vector<32x36xf32>
    %92 = arith.truncf %91 : vector<32x36xf32> to vector<32x36xbf16>
    %c0_38 = arith.constant 0 : index
    %c0_39 = arith.constant 0 : index
    %c128 = arith.constant 128 : index
    %93 = vector.load %arg8[%c0_38, %c0_39, %c128] : memref<1x32x292xbf16, #tpu.memory_space<vmem>>, vector<1x32x36xbf16>
    %94 = vector.shape_cast %93 : vector<1x32x36xbf16> to vector<32x36xbf16>
    %95 = vector.shape_cast %92 : vector<32x36xbf16> to vector<1x32x36xbf16>
    tpu.vector_store %arg8[%c0_38, %c0_39, %c128], %95 {strides = array<i32>} : memref<1x32x292xbf16, #tpu.memory_space<vmem>>, vector<1x32x36xbf16>,
    return
  }
  func.func @transform_0(%arg0: i32) -> (i32, i32, i32) {
    %c0_i32 = arith.constant 0 : i32
    %c0_i32_0 = arith.constant 0 : i32
    %c0_i32_1 = arith.constant 0 : i32
    return %arg0, %c0_i32, %c0_i32_0 : i32, i32, i32
  }
  func.func @transform_1(%arg0: i32) -> (i32, i32) {
    %c0_i32 = arith.constant 0 : i32
    %c0_i32_0 = arith.constant 0 : i32
    %c0_i32_1 = arith.constant 0 : i32
    return %c0_i32, %c0_i32_0 : i32, i32
  }
  func.func @transform_2(%arg0: i32) -> (i32, i32) {
    %c0_i32 = arith.constant 0 : i32
    %c0_i32_0 = arith.constant 0 : i32
    %c0_i32_1 = arith.constant 0 : i32
    return %c0_i32, %c0_i32_0 : i32, i32
  }
  func.func @transform_3(%arg0: i32) -> (i32, i32) {
    %c0_i32 = arith.constant 0 : i32
    %c0_i32_0 = arith.constant 0 : i32
    %c0_i32_1 = arith.constant 0 : i32
    return %c0_i32, %c0_i32_0 : i32, i32
  }
  func.func @transform_4(%arg0: i32) -> (i32, i32) {
    %c0_i32 = arith.constant 0 : i32
    %c0_i32_0 = arith.constant 0 : i32
    %c0_i32_1 = arith.constant 0 : i32
    return %c0_i32, %c0_i32_0 : i32, i32
  }
  func.func @transform_5(%arg0: i32) -> (i32, i32) {
    %c0_i32 = arith.constant 0 : i32
    %c0_i32_0 = arith.constant 0 : i32
    %c0_i32_1 = arith.constant 0 : i32
    return %c0_i32, %c0_i32_0 : i32, i32
  }
  func.func @transform_6(%arg0: i32) -> (i32, i32) {
    %c0_i32 = arith.constant 0 : i32
    %c0_i32_0 = arith.constant 0 : i32
    %c0_i32_1 = arith.constant 0 : i32
    return %c0_i32, %c0_i32_0 : i32, i32
  }
  func.func @transform_7(%arg0: i32) -> (i32, i32, i32) {
    %c0_i32 = arith.constant 0 : i32
    %c0_i32_0 = arith.constant 0 : i32
    %c0_i32_1 = arith.constant 0 : i32
    return %arg0, %c0_i32, %c0_i32_0 : i32, i32, i32
  }
}

</mosaic_0001>

<llo_original>
// kernel: tpu_custom_call.1
$region0: #{tpu_custom_call.1}
  #allocation0 [shape = 'u32[]', space=smem, size = 0x4, offset = 0x4, fixed_abs, tag = 'smem constant byte address 0x4 - core index']
  #allocation1 [shape = 'u32[144,128]{1,0:T(1,128)}', space=vmem, size = 0x12000, scoped, tag = 'internal scratch']
  #allocation2 [shape = 'bf16[32,36]{1,0:T(8,128)(2,1)}', space=vmem, size = 0x2000, scoped, tag = 'scratch operand']
  %s0 = inlined_call_operand.vmem [shape: bf16[2,8,292], index: 0, kind: input, shape index: {}]
  %s1 = inlined_call_operand.vmem [shape: bf16[32,32], index: 1, kind: input, shape index: {}]
  %s2 = inlined_call_operand.vmem [shape: f32[32,1], index: 2, kind: input, shape index: {}]
  %s3 = inlined_call_operand.vmem [shape: f32[32,1], index: 3, kind: input, shape index: {}]
  %s4 = inlined_call_operand.vmem [shape: f32[32,1], index: 4, kind: input, shape index: {}]
  %s5 = inlined_call_operand.vmem [shape: f32[32,1], index: 5, kind: input, shape index: {}]
  %s6 = inlined_call_operand.vmem [shape: f32[1,36], index: 6, kind: input, shape index: {}]
  %s7 = inlined_call_operand.hbm [shape: bf16[2,32,292], index: 7, kind: output, shape index: {}]
  %s8 = sld [smem:[#allocation0]]
  $region61: #{tpu_custom_call.1} parent=0
    _
  %s10 = ssub.s32 1, %s8
  %s11 = scalar_select 0, %s10, %s8
  $region1: #{tpu_custom_call.1} parent=0
    #allocation3 [shape = 'u8[49152]{0}', space=vmem, size = 0xc000, scoped, tag = 'output window, operand 0']
    #allocation4 [shape = 's32[2]{0}', space=sflag, size = 0x8, scoped, tag = 'scoped memory for tpu_custom_call.1']
    %12 = vsyncpa [#allocation4], 0
    %s13 = scalar_lea.sflag [#allocation4], 1
    %14 = vsyncpa %s13, 0
    loop: start=0, step=1, limit=4
    $region2: #{tpu_custom_call.1} parent=1 // loop_pre_header
      _
    $region3: #{tpu_custom_call.1} parent=1 // loop_header
      %s16 = sphi 0, %s20
      %p17 = scmp.ge.s32.totalorder %s16, 4
      %s26 = sphi 0, %s28
      %s29 = sphi 0, %s26
      %s30 = sphi 0, %s29
      %s46 = sphi 0, %s30
      %s50 = sphi 0, %s50
      %s52 = sphi 0, %s50
      %s53 = sphi 0, %s52
      %s67 = sphi 0, %s53
      %s71 = sphi 0, %s71
      %s73 = sphi 0, %s71
      %s74 = sphi 0, %s73
      %s88 = sphi 0, %s74
      %s92 = sphi 0, %s92
      %s94 = sphi 0, %s92
      %s95 = sphi 0, %s94
      %s109 = sphi 0, %s95
      %s113 = sphi 0, %s113
      %s115 = sphi 0, %s113
      %s116 = sphi 0, %s115
      %s130 = sphi 0, %s116
      %s134 = sphi 0, %s134
      %s136 = sphi 0, %s134
      %s137 = sphi 0, %s136
      %s151 = sphi 0, %s137
      %s155 = sphi 0, %s155
      %s157 = sphi 0, %s155
      %s158 = sphi 0, %s157
      %s172 = sphi 0, %s158
      %s178 = sphi 0, %s180
      %s181 = sphi 0, %s178
      %s182 = sphi 0, %s181
      %s198 = sphi 0, %s182
    $region4: #{tpu_custom_call.1} parent=1 // loop_header_branch
      %19 = sbr.rel (%p17) target = $region8
    $region5: #{tpu_custom_call.1} parent=1 // loop_body
      %s21 = ssub.s32 %s16, 1
      %s22 = ssub.s32 %s16, 2
      %s23 = sadd.s32 %s16, 1
      %s24 = ssub.s32 %s16, %s23
      %p25 = scmp.eq.s32.totalorder %s24, 0
      %s27 = sadd.s32 %s26, 1
      %s28 = scalar_select %p25, %s26, %s27
      %p31 = pneg %p25
      %p32 = scmp.eq.s32.totalorder %s16, 1
      %p33 = por %p31, %p32
      %p34 = scmp.ne.s32.totalorder %s26, %s29
      %p35 = scmp.eq.s32.totalorder %s16, 0
      %p36 = por %p34, %p35
      %p37 = scmp.ne.s32.totalorder %s26, %s29
      %p38 = scmp.eq.s32.totalorder %s21, 1
      %p39 = por %p37, %p38
      %p40 = scmp.ne.s32.totalorder %s29, %s30
      %p41 = scmp.eq.s32.totalorder %s21, 0
      %p42 = por %p40, %p41
      %p43 = scmp.ne.s32.totalorder %s29, %s30
      %p44 = scmp.eq.s32.totalorder %s22, 1
      %p45 = por %p43, %p44
      %p47 = scmp.ne.s32.totalorder %s30, %s46
      %p48 = scmp.eq.s32.totalorder %s22, 0
      %p49 = por %p47, %p48
      %s51 = sadd.s32 %s50, 1
      %p54 = scmp.eq.s32.totalorder %s16, 1
      %p55 = scmp.ne.s32.totalorder %s50, %s52
      %p56 = scmp.eq.s32.totalorder %s16, 0
      %p57 = por %p55, %p56
      %p58 = scmp.ne.s32.totalorder %s50, %s52
      %p59 = scmp.eq.s32.totalorder %s21, 1
      %p60 = por %p58, %p59
      %p61 = scmp.ne.s32.totalorder %s52, %s53
      %p62 = scmp.eq.s32.totalorder %s21, 0
      %p63 = por %p61, %p62
      %p64 = scmp.ne.s32.totalorder %s52, %s53
      %p65 = scmp.eq.s32.totalorder %s22, 1
      %p66 = por %p64, %p65
      %p68 = scmp.ne.s32.totalorder %s53, %s67
      %p69 = scmp.eq.s32.totalorder %s22, 0
      %p70 = por %p68, %p69
      %s72 = sadd.s32 %s71, 1
      %p75 = scmp.eq.s32.totalorder %s16, 1
      %p76 = scmp.ne.s32.totalorder %s71, %s73
      %p77 = scmp.eq.s32.totalorder %s16, 0
      %p78 = por %p76, %p77
      %p79 = scmp.ne.s32.totalorder %s71, %s73
      %p80 = scmp.eq.s32.totalorder %s21, 1
      %p81 = por %p79, %p80
      %p82 = scmp.ne.s32.totalorder %s73, %s74
      %p83 = scmp.eq.s32.totalorder %s21, 0
      %p84 = por %p82, %p83
      %p85 = scmp.ne.s32.totalorder %s73, %s74
      %p86 = scmp.eq.s32.totalorder %s22, 1
      %p87 = por %p85, %p86
      %p89 = scmp.ne.s32.totalorder %s74, %s88
      %p90 = scmp.eq.s32.totalorder %s22, 0
      %p91 = por %p89, %p90
      %s93 = sadd.s32 %s92, 1
      %p96 = scmp.eq.s32.totalorder %s16, 1
      %p97 = scmp.ne.s32.totalorder %s92, %s94
      %p98 = scmp.eq.s32.totalorder %s16, 0
      %p99 = por %p97, %p98
      %p100 = scmp.ne.s32.totalorder %s92, %s94
      %p101 = scmp.eq.s32.totalorder %s21, 1
      %p102 = por %p100, %p101
      %p103 = scmp.ne.s32.totalorder %s94, %s95
      %p104 = scmp.eq.s32.totalorder %s21, 0
      %p105 = por %p103, %p104
      %p106 = scmp.ne.s32.totalorder %s94, %s95
      %p107 = scmp.eq.s32.totalorder %s22, 1
      %p108 = por %p106, %p107
      %p110 = scmp.ne.s32.totalorder %s95, %s109
      %p111 = scmp.eq.s32.totalorder %s22, 0
      %p112 = por %p110, %p111
      %s114 = sadd.s32 %s113, 1
      %p117 = scmp.eq.s32.totalorder %s16, 1
      %p118 = scmp.ne.s32.totalorder %s113, %s115
      %p119 = scmp.eq.s32.totalorder %s16, 0
      %p120 = por %p118, %p119
      %p121 = scmp.ne.s32.totalorder %s113, %s115
      %p122 = scmp.eq.s32.totalorder %s21, 1
      %p123 = por %p121, %p122
      %p124 = scmp.ne.s32.totalorder %s115, %s116
      %p125 = scmp.eq.s32.totalorder %s21, 0
      %p126 = por %p124, %p125
      %p127 = scmp.ne.s32.totalorder %s115, %s116
      %p128 = scmp.eq.s32.totalorder %s22, 1
      %p129 = por %p127, %p128
      %p131 = scmp.ne.s32.totalorder %s116, %s130
      %p132 = scmp.eq.s32.totalorder %s22, 0
      %p133 = por %p131, %p132
      %s135 = sadd.s32 %s134, 1
      %p138 = scmp.eq.s32.totalorder %s16, 1
      %p139 = scmp.ne.s32.totalorder %s134, %s136
      %p140 = scmp.eq.s32.totalorder %s16, 0
      %p141 = por %p139, %p140
      %p142 = scmp.ne.s32.totalorder %s134, %s136
      %p143 = scmp.eq.s32.totalorder %s21, 1
      %p144 = por %p142, %p143
      %p145 = scmp.ne.s32.totalorder %s136, %s137
      %p146 = scmp.eq.s32.totalorder %s21, 0
      %p147 = por %p145, %p146
      %p148 = scmp.ne.s32.totalorder %s136, %s137
      %p149 = scmp.eq.s32.totalorder %s22, 1
      %p150 = por %p148, %p149
      %p152 = scmp.ne.s32.totalorder %s137, %s151
      %p153 = scmp.eq.s32.totalorder %s22, 0
      %p154 = por %p152, %p153
      %s156 = sadd.s32 %s155, 1
      %p159 = scmp.eq.s32.totalorder %s16, 1
      %p160 = scmp.ne.s32.totalorder %s155, %s157
      %p161 = scmp.eq.s32.totalorder %s16, 0
      %p162 = por %p160, %p161
      %p163 = scmp.ne.s32.totalorder %s155, %s157
      %p164 = scmp.eq.s32.totalorder %s21, 1
      %p165 = por %p163, %p164
      %p166 = scmp.ne.s32.totalorder %s157, %s158
      %p167 = scmp.eq.s32.totalorder %s21, 0
      %p168 = por %p166, %p167
      %p169 = scmp.ne.s32.totalorder %s157, %s158
      %p170 = scmp.eq.s32.totalorder %s22, 1
      %p171 = por %p169, %p170
      %p173 = scmp.ne.s32.totalorder %s158, %s172
      %p174 = scmp.eq.s32.totalorder %s22, 0
      %p175 = por %p173, %p174
      %s176 = ssub.s32 %s16, %s23
      %p177 = scmp.eq.s32.totalorder %s176, 0
      %s179 = sadd.s32 %s178, 1
      %s180 = scalar_select %p177, %s178, %s179
      %p183 = pneg %p177
      %p184 = scmp.eq.s32.totalorder %s16, 1
      %p185 = por %p183, %p184
      %p186 = scmp.ne.s32.totalorder %s178, %s181
      %p187 = scmp.eq.s32.totalorder %s16, 0
      %p188 = por %p186, %p187
      %p189 = scmp.ne.s32.totalorder %s178, %s181
      %p190 = scmp.eq.s32.totalorder %s21, 1
      %p191 = por %p189, %p190
      %p192 = scmp.ne.s32.totalorder %s181, %s182
      %p193 = scmp.eq.s32.totalorder %s21, 0
      %p194 = por %p192, %p193
      %p195 = scmp.ne.s32.totalorder %s181, %s182
      %p196 = scmp.eq.s32.totalorder %s22, 1
      %p197 = por %p195, %p196
      %p199 = scmp.ne.s32.totalorder %s182, %s198
      %p200 = scmp.eq.s32.totalorder %s22, 0
      %p201 = por %p199, %p200
      %p202 = scmp.le.s32.totalorder 1, %s16
      %p203 = scmp.lt.s32.totalorder %s16, 3
      %p204 = pnand %p202, %p203
      %p205 = pneg %p204
      // Predicated region
      $region9: #{tpu_custom_call.1} parent=5 // pred_check
        _
      $region10: #{tpu_custom_call.1} parent=5 // pred_check_branch
        %207 = sbr.rel (%p204) target = $region12
      $region11: #{tpu_custom_call.1} parent=5 // pred_region
        %s208 = ssub.s32 %s16, 1
        // Predicated region
        $region13: #{tpu_custom_call.1} parent=11 // pred_check
          %p209 = pneg %p63
        $region14: #{tpu_custom_call.1} parent=11 // pred_check_branch
          %211 = sbr.rel (%p209) target = $region16
        $region15: #{tpu_custom_call.1} parent=11 // pred_region
          _
        $region16: #{tpu_custom_call.1} parent=11 // pred_fallthru
          _
        // Predicated region
        $region17: #{tpu_custom_call.1} parent=11 // pred_check
          %p212 = pneg %p84
        $region18: #{tpu_custom_call.1} parent=11 // pred_check_branch
          %214 = sbr.rel (%p212) target = $region20
        $region19: #{tpu_custom_call.1} parent=11 // pred_region
          _
        $region20: #{tpu_custom_call.1} parent=11 // pred_fallthru
          _
        // Predicated region
        $region21: #{tpu_custom_call.1} parent=11 // pred_check
          %p215 = pneg %p105
        $region22: #{tpu_custom_call.1} parent=11 // pred_check_branch
          %217 = sbr.rel (%p215) target = $region24
        $region23: #{tpu_custom_call.1} parent=11 // pred_region
          _
        $region24: #{tpu_custom_call.1} parent=11 // pred_fallthru
          _
        // Predicated region
        $region25: #{tpu_custom_call.1} parent=11 // pred_check
          %p218 = pneg %p126
        $region26: #{tpu_custom_call.1} parent=11 // pred_check_branch
          %220 = sbr.rel (%p218) target = $region28
        $region27: #{tpu_custom_call.1} parent=11 // pred_region
          _
        $region28: #{tpu_custom_call.1} parent=11 // pred_fallthru
          _
        // Predicated region
        $region29: #{tpu_custom_call.1} parent=11 // pred_check
          %p221 = pneg %p147
        $region30: #{tpu_custom_call.1} parent=11 // pred_check_branch
          %223 = sbr.rel (%p221) target = $region32
        $region31: #{tpu_custom_call.1} parent=11 // pred_region
          _
        $region32: #{tpu_custom_call.1} parent=11 // pred_fallthru
          _
        // Predicated region
        $region33: #{tpu_custom_call.1} parent=11 // pred_check
          %p224 = pneg %p168
        $region34: #{tpu_custom_call.1} parent=11 // pred_check_branch
          %226 = sbr.rel (%p224) target = $region36
        $region35: #{tpu_custom_call.1} parent=11 // pred_region
          _
        $region36: #{tpu_custom_call.1} parent=11 // pred_fallthru
          _
      $region12: #{tpu_custom_call.1} parent=5 // pred_fallthru
        _
      %p227 = scmp.lt.s32.totalorder %s16, 2
      // Predicated region
      $region37: #{tpu_custom_call.1} parent=5 // pred_check
        %p228 = pneg %p227
      $region38: #{tpu_custom_call.1} parent=5 // pred_check_branch
        %230 = sbr.rel (%p228) target = $region40
      $region39: #{tpu_custom_call.1} parent=5 // pred_region
        // Predicated region
        $region41: #{tpu_custom_call.1} parent=39 // pred_check
          %p231 = pneg %p36
        $region42: #{tpu_custom_call.1} parent=39 // pred_check_branch
          %233 = sbr.rel (%p231) target = $region44
        $region43: #{tpu_custom_call.1} parent=39 // pred_region
          %p234 = scmp.lt.s32.totalorder %s16, 1
          %s235 = scalar_select %p234, %s16, 1
          %s236 = smul.addr %s235, 3
          %s237 = smul.addr %s236, 4
          %s238 = scalar_lea.vmem %s0, %s237
        $region44: #{tpu_custom_call.1} parent=39 // pred_fallthru
          _
      $region40: #{tpu_custom_call.1} parent=5 // pred_fallthru
        _
      %p239 = scmp.le.s32.totalorder 1, %s16
      %p240 = scmp.lt.s32.totalorder %s16, 3
      %p241 = pnand %p239, %p240
      %p242 = pneg %p241
      // Predicated region
      $region45: #{tpu_custom_call.1} parent=5 // pred_check
        _
      $region46: #{tpu_custom_call.1} parent=5 // pred_check_branch
        %244 = sbr.rel (%p241) target = $region48
      $region47: #{tpu_custom_call.1} parent=5 // pred_region
        %s245 = ssub.s32 %s16, 1
        %p246 = scmp.lt.s32.totalorder %s21, 1
        %s247 = scalar_select %p246, %s21, 1
        %s248 = smul.addr %s247, 3
        %s249 = smul.addr %s248, 4
        %s250 = scalar_lea.vmem %s0, %s249
        %p251 = pneg %p42
        %p252 = pneg %p39
        %p253 = pneg %p63
        %p254 = pneg %p60
        %p255 = pneg %p84
        %p256 = pneg %p81
        %p257 = pneg %p105
        %p258 = pneg %p102
        %p259 = pneg %p126
        %p260 = pneg %p123
        %p261 = pneg %p147
        %p262 = pneg %p144
        %p263 = pneg %p168
        %p264 = pneg %p165
        %p265 = pneg %p194
        %p266 = pneg %p191
        %s267 = sand.u32 %s181, 1
        %s268 = scalar_lea.sflag [#allocation4], %s267
        %s269 = sand.u32 %s181, 1
        %s270 = smul.addr %s269, 48
        %s271 = scalar_lea.vmem [#allocation3], %s270
        %p272 = scmp.lt.s32.totalorder %s21, 1
        %s273 = scalar_select %p272, %s21, 1
        %s274 = smul.addr %s273, 3
        %s275 = smul.addr %s274, 4
        %s276 = scalar_lea.vmem %s0, %s275
        %v278 = vld [vmem:[%s276] sm:$0xff]
        %v280 = vrot.slane %v278, 4
        %vm282 = vcmask 289792
        %283 = vst.msk [vmem:[#allocation2] sm:$0xf] %vm282, %v280
        %284 = vrot.lane.b32.xlu0 %v278, 127
        %v285 = vpop.permute.xlu0 %284
        %v286 = vrot.slane %v285, 4
        %288 = vst.msk [vmem:[#allocation2 + $0x4] sm:$0xf] %vm282, %v286
        %289 = vrot.lane.b32.xlu0 %v278, 122
        %v290 = vpop.permute.xlu0 %289
        %v291 = vrot.slane %v290, 4
        %293 = vst.msk [vmem:[#allocation2 + $0x8] sm:$0xf] %vm282, %v291
        %294 = vrot.lane.b32.xlu0 %v278, 121
        %v295 = vpop.permute.xlu0 %294
        %v296 = vrot.slane %v295, 4
        %298 = vst.msk [vmem:[#allocation2 + $0xc] sm:$0xf] %vm282, %v296
        %v299 = vld [vmem:[%s1] sm:$0xf]
        %v300 = vld [vmem:[%s1 + $0x4] sm:$0xf]
        %v301 = vld [vmem:[%s1 + $0x8] sm:$0xf]
        %v302 = vld [vmem:[%s1 + $0xc] sm:$0xf]
        %v303 = vld [vmem:[#allocation2] sm:$0xf]
        %v304 = vld [vmem:[#allocation2 + $0x4] sm:$0xf]
        %v305 = vld [vmem:[#allocation2 + $0x8] sm:$0xf]
        %v306 = vld [vmem:[#allocation2 + $0xc] sm:$0xf]
        %v307 = vld [vmem:[%s2] sm:$0xff]
        %v308 = vld [vmem:[%s2 + $0x8] sm:$0xff]
        %v309 = vld [vmem:[%s2 + $0x10] sm:$0xff]
        %v310 = vld [vmem:[%s2 + $0x18] sm:$0xff]
        %312 = vset.pattern.permute.xlu0 0
        %313 = vperm.xlu0 %312, %v307
        %v314 = vpop.permute.xlu0 %313
        %317 = vset.pattern.permute.xlu0 0
        %318 = vperm.xlu0 %317, %v308
        %v319 = vpop.permute.xlu0 %318
        %322 = vset.pattern.permute.xlu0 0
        %323 = vperm.xlu0 %322, %v309
        %v324 = vpop.permute.xlu0 %323
        %327 = vset.pattern.permute.xlu0 0
        %328 = vperm.xlu0 %327, %v310
        %v329 = vpop.permute.xlu0 %328
        %v335 = vunpack.c.l.b16 %v299
        %v336 = vunpack.c.l.b16 %v300
        %v337 = vunpack.c.l.b16 %v301
        %v338 = vunpack.c.l.b16 %v302
        %v339 = vpack.c.b16 %v336, %v335
        %v340 = vpack.c.b16 %v338, %v337
        %v345 = vunpack.c.l.b16 %v303
        %v346 = vunpack.c.l.b16 %v304
        %v347 = vunpack.c.l.b16 %v305
        %v348 = vunpack.c.l.b16 %v306
        %v349 = vpack.c.b16 %v346, %v345
        %v350 = vpack.c.b16 %v348, %v347
        %vm353 = vcmask 261120
        %v355 = vsel %vm353, %v339, 0
        %v358 = vsel %vm353, %v340, 0
        %360 = vmatprep.subr.bf16.mxu0 0
        %361 = vmatpush1.bf16.msra.mxu0 0
        %362 = vmatprep.subr.bf16.mxu0 0
        %363 = vmatpush1.bf16.msra.mxu0 0
        %364 = vmatprep.subr.bf16.mxu0 0
        %365 = vmatpush1.bf16.msra.mxu0 0
        %366 = vmatprep.subr.bf16.mxu0 0
        %367 = vmatpush1.bf16.msra.mxu0 0
        %368 = vmatprep.subr.bf16.mxu0 0
        %369 = vmatpush1.bf16.msra.mxu0 0
        %370 = vmatprep.subr.bf16.mxu0 0
        %371 = vmatpush1.bf16.msra.mxu0 0
        %372 = vmatprep.subr.bf16.mxu0 0
        %373 = vmatpush1.bf16.msra.mxu0 %v350
        %374 = vmatprep.subr.bf16.mxu0 0
        %375 = vmatpush1.bf16.msra.mxu0 %v349
        %376 = vmatprep.subr.bf16.mxu0 0
        %377 = vmatpush2.bf16.msra.mxu0 0
        %378 = vmatprep.subr.bf16.mxu0 0
        %379 = vmatpush2.bf16.msra.mxu0 0
        %380 = vmatprep.subr.bf16.mxu0 0
        %381 = vmatpush2.bf16.msra.mxu0 0
        %382 = vmatprep.subr.bf16.mxu0 0
        %383 = vmatpush2.bf16.msra.mxu0 0
        %384 = vmatprep.subr.bf16.mxu0 0
        %385 = vmatpush2.bf16.msra.mxu0 0
        %386 = vmatprep.subr.bf16.mxu0 0
        %387 = vmatpush2.bf16.msra.mxu0 0
        %388 = vmatprep.subr.bf16.mxu0 0
        %389 = vmatpush2.bf16.msra.mxu0 0
        %390 = vmatprep.subr.bf16.mxu0 0
        %391 = vmatpush2.bf16.msra.mxu0 0
        %392 = vmatprep.mubr.bf16.mxu0 0
        %393 = vmatmul.mubr.bf16.gmra.mxu0 %v355
        %v394 = vpop.f32.mrf.mxu0
        %v395 = vadd.f32 %v314, %v394
        %v396 = vpop.f32.mrf.mxu0
        %v397 = vpop.f32.mrf.mxu0
        %v398 = vadd.f32 %v319, %v397
        %v399 = vpop.f32.mrf.mxu0
        %400 = vmatprep.mubr.bf16.mxu0 0
        %401 = vmatmul.mubr.bf16.gmra.mxu0 %v358
        %v402 = vpop.f32.mrf.mxu0
        %v403 = vadd.f32 %v324, %v402
        %v404 = vpop.f32.mrf.mxu0
        %v405 = vpop.f32.mrf.mxu0
        %v406 = vadd.f32 %v329, %v405
        %v407 = vpop.f32.mrf.mxu0
        %408 = vdwg.mxu0
        %v409 = vld [vmem:[%s6] sm:$0x1]
        %vm410 = vcmp.gt.f32.partialorder %v409, 0.5
        %v411 = vld [vmem:[%s5] sm:$0xff]
        %v412 = vld [vmem:[%s5 + $0x8] sm:$0xff]
        %v413 = vld [vmem:[%s5 + $0x10] sm:$0xff]
        %v414 = vld [vmem:[%s5 + $0x18] sm:$0xff]
        %v415 = vsel %vm410, 1, 0
        %v416 = vlaneseq
        %v417 = vshrl.u32 %v416, 7
        %v418 = vsub.s32 0, %v417
        %v419 = vrot.slane %v415, %v418
        %vm420 = vcmp.eq.s32.totalorder %v419, 1
        %v421 = vsel %vm420, %v395, 0.0
        %v422 = vsel %vm420, %v398, 0.0
        %v423 = vsel %vm420, %v403, 0.0
        %v424 = vsel %vm420, %v406, 0.0
        %vm425 = vcmask 293888
        %v426 = vsel %vm425, %v421, 0.0
        %427 = vadd.xlane.f32.xlu0 %v426
        %v428 = vpop.xlane.xlu0 %427
        %v429 = vsel %vm425, %v422, 0.0
        %430 = vadd.xlane.f32.xlu0 %v429
        %v431 = vpop.xlane.xlu0 %430
        %v432 = vsel %vm425, %v423, 0.0
        %433 = vadd.xlane.f32.xlu0 %v432
        %v434 = vpop.xlane.xlu0 %433
        %v435 = vsel %vm425, %v424, 0.0
        %436 = vadd.xlane.f32.xlu0 %v435
        %v437 = vpop.xlane.xlu0 %436
        %v438 = vmul.f32 %v428, %v411
        %v439 = vmul.f32 %v431, %v412
        %v440 = vmul.f32 %v434, %v413
        %v441 = vmul.f32 %v437, %v414
        %vm442 = vcmask 7168
        %v443 = vsel %vm442, %v438, 0.0
        %v444 = vsel %vm442, %v439, 0.0
        %v445 = vadd.f32 %v443, %v444
        %v446 = vsel %vm442, %v440, 0.0
        %v447 = vadd.f32 %v445, %v446
        %v448 = vsel %vm442, %v441, 0.0
        %v449 = vadd.f32 %v447, %v448
        %450 = vadd.xlane.f32.xlu0 %v449
        %v451 = vpop.xlane.xlu0 %450
        %v452 = vrot.slane %v451, 4
        %v453 = vadd.f32 %v451, %v452
        %v454 = vrot.slane %v453, 2
        %v455 = vadd.f32 %v453, %v454
        %v456 = vrot.slane %v455, 1
        %v457 = vadd.f32 %v455, %v456
        %s458 = vtos %v457
        %v459 = vsel %vm442, %v428, 0.0
        %v460 = vsel %vm442, %v431, 0.0
        %v461 = vadd.f32 %v459, %v460
        %v462 = vsel %vm442, %v434, 0.0
        %v463 = vadd.f32 %v461, %v462
        %v464 = vsel %vm442, %v437, 0.0
        %v465 = vadd.f32 %v463, %v464
        %466 = vadd.xlane.f32.xlu0 %v465
        %v467 = vpop.xlane.xlu0 %466
        %v468 = vrot.slane %v467, 4
        %v469 = vadd.f32 %v467, %v468
        %v470 = vrot.slane %v469, 2
        %v471 = vadd.f32 %v469, %v470
        %v472 = vrot.slane %v471, 1
        %v473 = vadd.f32 %v471, %v472
        %s474 = vtos %v473
        %s475 = ssub.f32 %s474, %s458
        %v476 = vstv %s458
        %v477 = vmul.f32 %v411, %v476
        %v478 = vmul.f32 %v412, %v476
        %v479 = vmul.f32 %v413, %v476
        %v480 = vmul.f32 %v414, %v476
        %v481 = vsub.f32 1.0, %v411
        %v482 = vsub.f32 1.0, %v412
        %v483 = vsub.f32 1.0, %v413
        %v484 = vsub.f32 1.0, %v414
        %v485 = vstv %s475
        %v486 = vmul.f32 %v481, %v485
        %v487 = vmul.f32 %v482, %v485
        %v488 = vmul.f32 %v483, %v485
        %v489 = vmul.f32 %v484, %v485
        %v490 = vadd.f32 %v477, %v486
        %v491 = vadd.f32 %v478, %v487
        %v492 = vadd.f32 %v479, %v488
        %v493 = vadd.f32 %v480, %v489
        %v494 = vmul.f32 %v490, 0.00390625
        %v495 = vmul.f32 %v491, 0.00390625
        %v496 = vmul.f32 %v492, 0.00390625
        %v497 = vmul.f32 %v493, 0.00390625
        %499 = vset.pattern.permute.xlu0 0
        %500 = vperm.xlu0 %499, %v494
        %v501 = vpop.permute.xlu0 %500
        %504 = vset.pattern.permute.xlu0 0
        %505 = vperm.xlu0 %504, %v495
        %v506 = vpop.permute.xlu0 %505
        %509 = vset.pattern.permute.xlu0 0
        %510 = vperm.xlu0 %509, %v496
        %v511 = vpop.permute.xlu0 %510
        %514 = vset.pattern.permute.xlu0 0
        %515 = vperm.xlu0 %514, %v497
        %v516 = vpop.permute.xlu0 %515
        %v518 = vsub.f32 %v395, %v501
        %v519 = vsub.f32 %v398, %v506
        %v520 = vsub.f32 %v403, %v511
        %v521 = vsub.f32 %v406, %v516
        %v522 = vmul.f32 %v518, %v518
        %v523 = vmul.f32 %v519, %v519
        %v524 = vmul.f32 %v520, %v520
        %v525 = vmul.f32 %v521, %v521
        %v526 = vsel %vm420, %v522, 0.0
        %v527 = vsel %vm420, %v523, 0.0
        %v528 = vsel %vm420, %v524, 0.0
        %v529 = vsel %vm420, %v525, 0.0
        %v530 = vsel %vm425, %v526, 0.0
        %531 = vadd.xlane.f32.xlu0 %v530
        %v532 = vpop.xlane.xlu0 %531
        %v533 = vsel %vm425, %v527, 0.0
        %534 = vadd.xlane.f32.xlu0 %v533
        %v535 = vpop.xlane.xlu0 %534
        %v536 = vsel %vm425, %v528, 0.0
        %537 = vadd.xlane.f32.xlu0 %v536
        %v538 = vpop.xlane.xlu0 %537
        %v539 = vsel %vm425, %v529, 0.0
        %540 = vadd.xlane.f32.xlu0 %v539
        %v541 = vpop.xlane.xlu0 %540
        %v542 = vmul.f32 %v532, %v411
        %v543 = vmul.f32 %v535, %v412
        %v544 = vmul.f32 %v538, %v413
        %v545 = vmul.f32 %v541, %v414
        %v546 = vsel %vm442, %v542, 0.0
        %v547 = vsel %vm442, %v543, 0.0
        %v548 = vadd.f32 %v546, %v547
        %v549 = vsel %vm442, %v544, 0.0
        %v550 = vadd.f32 %v548, %v549
        %v551 = vsel %vm442, %v545, 0.0
        %v552 = vadd.f32 %v550, %v551
        %553 = vadd.xlane.f32.xlu0 %v552
        %v554 = vpop.xlane.xlu0 %553
        %v555 = vrot.slane %v554, 4
        %v556 = vadd.f32 %v554, %v555
        %v557 = vrot.slane %v556, 2
        %v558 = vadd.f32 %v556, %v557
        %v559 = vrot.slane %v558, 1
        %v560 = vadd.f32 %v558, %v559
        %s561 = vtos %v560
        %v562 = vsel %vm442, %v532, 0.0
        %v563 = vsel %vm442, %v535, 0.0
        %v564 = vadd.f32 %v562, %v563
        %v565 = vsel %vm442, %v538, 0.0
        %v566 = vadd.f32 %v564, %v565
        %v567 = vsel %vm442, %v541, 0.0
        %v568 = vadd.f32 %v566, %v567
        %569 = vadd.xlane.f32.xlu0 %v568
        %v570 = vpop.xlane.xlu0 %569
        %v571 = vrot.slane %v570, 4
        %v572 = vadd.f32 %v570, %v571
        %v573 = vrot.slane %v572, 2
        %v574 = vadd.f32 %v572, %v573
        %v575 = vrot.slane %v574, 1
        %v576 = vadd.f32 %v574, %v575
        %s577 = vtos %v576
        %s578 = ssub.f32 %s577, %s561
        %v579 = vstv %s561
        %v580 = vmul.f32 %v411, %v579
        %v581 = vmul.f32 %v412, %v579
        %v582 = vmul.f32 %v413, %v579
        %v583 = vmul.f32 %v414, %v579
        %v584 = vstv %s578
        %v585 = vmul.f32 %v481, %v584
        %v586 = vmul.f32 %v482, %v584
        %v587 = vmul.f32 %v483, %v584
        %v588 = vmul.f32 %v484, %v584
        %v589 = vadd.f32 %v580, %v585
        %v590 = vadd.f32 %v581, %v586
        %v591 = vadd.f32 %v582, %v587
        %v592 = vadd.f32 %v583, %v588
        %v593 = vmul.f32 %v589, 0.00390625
        %v594 = vmul.f32 %v590, 0.00390625
        %v595 = vmul.f32 %v591, 0.00390625
        %v596 = vmul.f32 %v592, 0.00390625
        %v597 = vadd.f32 %v593, 1e-05
        %v598 = vadd.f32 %v594, 1e-05
        %v599 = vadd.f32 %v595, 1e-05
        %v600 = vadd.f32 %v596, 1e-05
        %v601 = vrsqrt.pop %v597
        %v602 = vrsqrt.pop %v598
        %v603 = vrsqrt.pop %v599
        %v604 = vrsqrt.pop %v600
        %v605 = vld [vmem:[%s3] sm:$0xff]
        %v606 = vld [vmem:[%s3 + $0x8] sm:$0xff]
        %v607 = vld [vmem:[%s3 + $0x10] sm:$0xff]
        %v608 = vld [vmem:[%s3 + $0x18] sm:$0xff]
        %v609 = vmul.f32 %v601, %v605
        %v610 = vmul.f32 %v602, %v606
        %v611 = vmul.f32 %v603, %v607
        %v612 = vmul.f32 %v604, %v608
        %614 = vset.pattern.permute.xlu0 0
        %615 = vperm.xlu0 %614, %v609
        %v616 = vpop.permute.xlu0 %615
        %619 = vset.pattern.permute.xlu0 0
        %620 = vperm.xlu0 %619, %v610
        %v621 = vpop.permute.xlu0 %620
        %624 = vset.pattern.permute.xlu0 0
        %625 = vperm.xlu0 %624, %v611
        %v626 = vpop.permute.xlu0 %625
        %629 = vset.pattern.permute.xlu0 0
        %630 = vperm.xlu0 %629, %v612
        %v631 = vpop.permute.xlu0 %630
        %v633 = vmul.f32 %v518, %v616
        %v634 = vmul.f32 %v519, %v621
        %v635 = vmul.f32 %v520, %v626
        %v636 = vmul.f32 %v521, %v631
        %v637 = vld [vmem:[%s4] sm:$0xff]
        %v638 = vld [vmem:[%s4 + $0x8] sm:$0xff]
        %v639 = vld [vmem:[%s4 + $0x10] sm:$0xff]
        %v640 = vld [vmem:[%s4 + $0x18] sm:$0xff]
        %642 = vset.pattern.permute.xlu0 0
        %643 = vperm.xlu0 %642, %v637
        %v644 = vpop.permute.xlu0 %643
        %647 = vset.pattern.permute.xlu0 0
        %648 = vperm.xlu0 %647, %v638
        %v649 = vpop.permute.xlu0 %648
        %652 = vset.pattern.permute.xlu0 0
        %653 = vperm.xlu0 %652, %v639
        %v654 = vpop.permute.xlu0 %653
        %657 = vset.pattern.permute.xlu0 0
        %658 = vperm.xlu0 %657, %v640
        %v659 = vpop.permute.xlu0 %658
        %v661 = vadd.f32 %v633, %v644
        %v662 = vadd.f32 %v634, %v649
        %v663 = vadd.f32 %v635, %v654
        %v664 = vadd.f32 %v636, %v659
        %vm665 = vcmp.ge.f32.partialorder %v661, 0.0
        %vm666 = vcmp.ge.f32.partialorder %v662, 0.0
        %vm667 = vcmp.ge.f32.partialorder %v663, 0.0
        %vm668 = vcmp.ge.f32.partialorder %v664, 0.0
        %v669 = vmul.f32 %v661, 0.2
        %v670 = vmul.f32 %v662, 0.2
        %v671 = vmul.f32 %v663, 0.2
        %v672 = vmul.f32 %v664, 0.2
        %v673 = vsel %vm665, %v661, %v669
        %v674 = vsel %vm666, %v662, %v670
        %v675 = vsel %vm667, %v663, %v671
        %v676 = vsel %vm668, %v664, %v672
        %v677 = vsel %vm420, %v673, 0.0
        %v678 = vsel %vm420, %v674, 0.0
        %v679 = vsel %vm420, %v675, 0.0
        %v680 = vsel %vm420, %v676, 0.0
        %v681 = vpack.c.bf16 %v678, %v677
        %v682 = vpack.c.bf16 %v680, %v679
        %v685 = vunpack.c.l.b16 %v681
        %v686 = vunpack.c.h.b16 %v681
        %v687 = vunpack.c.l.b16 %v682
        %v688 = vunpack.c.h.b16 %v682
        %v689 = vpack.c.b16 %v685, %v685
        %v690 = vpack.c.b16 %v686, %v686
        %v691 = vpack.c.b16 %v687, %v687
        %v692 = vpack.c.b16 %v688, %v688
        %697 = vst.msk [vmem:[%s271 + $0x4] sm:$0xf] %vm282, %v689
        %698 = vst.msk [vmem:[%s271 + $0x10] sm:$0xf] %vm282, %v690
        %699 = vst.msk [vmem:[%s271 + $0x1c] sm:$0xf] %vm282, %v691
        %700 = vst.msk [vmem:[%s271 + $0x28] sm:$0xf] %vm282, %v692
        %s701 = sand.u32 %s181, 1
        %s702 = scalar_lea.sflag [#allocation4], %s701
        %s703 = sand.u32 %s181, 1
        %s704 = smul.addr %s703, 48
        %s705 = scalar_lea.vmem [#allocation3], %s704
        // Predicated region
        $region49: #{tpu_custom_call.1} parent=47 // pred_check
          %p706 = pneg %p191
        $region50: #{tpu_custom_call.1} parent=47 // pred_check_branch
          %708 = sbr.rel (%p706) target = $region52
        $region51: #{tpu_custom_call.1} parent=47 // pred_region
          %s710 = ssub.s32 768, 768
          %711 = vsyncadd %s702, %s710
          %s712 = smul.addr %s21, 12
          %s713 = smul.addr %s712, 64
          %s714 = scalar_lea.hbm %s7, %s713
          %s715 = sshll.u32 %s705, 4
          %s716 = int_to_ptr.vmem [resolvable:$true] %s715
          %721 = dma.vmem_to_hbm [thread:$0]  %s716, 768, %s714, %s702, 192, 192, 12
        $region52: #{tpu_custom_call.1} parent=47 // pred_fallthru
          _
      $region48: #{tpu_custom_call.1} parent=5 // pred_fallthru
        _
      %p722 = scmp.le.s32.totalorder 2, %s16
      // Predicated region
      $region53: #{tpu_custom_call.1} parent=5 // pred_check
        %p723 = pneg %p722
      $region54: #{tpu_custom_call.1} parent=5 // pred_check_branch
        %725 = sbr.rel (%p723) target = $region56
      $region55: #{tpu_custom_call.1} parent=5 // pred_region
        %s726 = ssub.s32 %s16, 2
        // Predicated region
        $region57: #{tpu_custom_call.1} parent=55 // pred_check
          %p727 = pneg %p197
        $region58: #{tpu_custom_call.1} parent=55 // pred_check_branch
          %729 = sbr.rel (%p727) target = $region60
        $region59: #{tpu_custom_call.1} parent=55 // pred_region
          %s730 = sand.u32 %s182, 1
          %s731 = scalar_lea.sflag [#allocation4], %s730
          %s732 = sand.u32 %s182, 1
          %s733 = smul.addr %s732, 48
          %s734 = scalar_lea.vmem [#allocation3], %s733
          %735 = dma.done %s731, 768
        $region60: #{tpu_custom_call.1} parent=55 // pred_fallthru
          _
      $region56: #{tpu_custom_call.1} parent=5 // pred_fallthru
        _
    $region6: #{tpu_custom_call.1} parent=1 // loop_footer
      %s20 = sadd.s32 1, %s16
    $region7: #{tpu_custom_call.1} parent=1 // loop_footer_branch
      %15 = sbr.rel target = $region3
    $region8: #{tpu_custom_call.1} parent=1 // loop_exit
      _
    %736 = vsyncpa [#allocation4], 1
    %s737 = scalar_lea.sflag [#allocation4], 1
    %738 = vsyncpa %s737, 1

</llo_original>
